<compile_context>
chip_gen: v6e
topology: v6e:2x2x1
jax: 0.10.0
libtpu: 0.0.40
codegen_flags: <defaults>
</compile_context>

<pallas_src>
import jax
import jax.numpy as jnp
from jax.experimental import pallas as pl
from jax.experimental.pallas import tpu as pltpu

SUBLANE = 8  # f32 sublane width: pad batch to this so each timestep is one clean vreg tile


def rnn_kernel(x_ref, wih_t_ref, whh_t_ref, b_ref, wlin_t_ref, blin_ref, out_ref):
    """x_ref: (T*Bp, D) bf16, already padded+flattened by the wrapper."""
    TB, D = x_ref.shape
    Bp = out_ref.shape[0]
    T = TB // Bp
    H = whh_t_ref.shape[0]

    # ---- Batched input projection (off the serial critical path) ----------
    # xh = x @ W_ih^T + (b_ih + b_hh): ONE (T*Bp, D) x (D, H) MXU matmul,
    # bf16 operands, f32 accumulate; fused bias broadcast happens once here.
    xh = (jnp.dot(x_ref[...], wih_t_ref[...], preferred_element_type=jnp.float32)
          + b_ref[...])                                        # (T*Bp, H) f32

    # ---- Serial recurrence: h_t = tanh(h_{t-1} @ W_hh^T + xh[t]) ----------
    # Fully unrolled (T is small & static). Bp == 8 keeps every slice, VPU add
    # and EUP tanh on full unmasked vregs.
    # TODO(synk): for long T / large H, pin W_hh in the MXU weight registers via
    # pltpu.matmul_push_rhs / matmul_acc_lhs / matmul_pop to remove the per-step
    # RHS reload from the serial chain.
    whh_t = whh_t_ref[...]                                     # (H, H) bf16
    h = jnp.zeros((Bp, H), jnp.float32)                        # PyTorch default h0 = 0
    for t in range(T):
        h = jnp.tanh(
            jnp.dot(h.astype(jnp.bfloat16), whh_t,
                    preferred_element_type=jnp.float32)
            + xh[t * Bp:(t + 1) * Bp, :])                      # aligned 8-row tile

    # ---- Head: Dropout(eval = identity) -> Linear(h -> 5) -> LogSoftmax(dim=1)
    # TODO(synk): training-mode dropout (p=0.3) not implemented; eval semantics used.
    ol = (jnp.dot(h, wlin_t_ref[...], preferred_element_type=jnp.float32)
          + blin_ref[...])                                     # (Bp, C) f32
    m = jnp.max(ol, axis=1, keepdims=True)
    shifted = ol - m
    lse = jnp.log(jnp.sum(jnp.exp(shifted), axis=1, keepdims=True))
    out_ref[...] = shifted - lse


def rnn_forward(inputs, params):
    """inputs: (T, B, D) float32, PyTorch nn.RNN default layout. Returns log-probs (B, 5)."""
    T, B, D = inputs.shape
    wih, whh, bih, bhh, wlin, blin = params
    H = wih.shape[0]
    C = wlin.shape[0]

    # --- Wrapper-side glue (plain JAX on contiguous HBM data: effectively free) ---
    Bp = max(SUBLANE, ((B + SUBLANE - 1) // SUBLANE) * SUBLANE)
    x_pad = jnp.zeros((T, Bp, D), jnp.float32).at[:, :B, :].set(inputs)
    x_flat = x_pad.reshape(T * Bp, D).astype(jnp.bfloat16)     # flatten OUTSIDE the kernel
    wih_t = wih.T.astype(jnp.bfloat16)                         # (D, H)
    whh_t = whh.T.astype(jnp.bfloat16)                         # (H, H)
    b = (bih + bhh).reshape(1, H).astype(jnp.float32)          # fold both RNN biases once
    wlin_t = wlin.T.astype(jnp.float32)                        # (H, C): head kept in f32
    blin2 = blin.reshape(1, C).astype(jnp.float32)

    flops = 2 * T * Bp * D * H + 2 * T * Bp * H * H + 2 * Bp * H * C
    transcendentals = T * Bp * H + Bp * C                      # tanh + exp
    bytes_accessed = (x_flat.size * 2 + wih_t.size * 2 + whh_t.size * 2
                      + (b.size + wlin_t.size + blin2.size) * 4 + Bp * C * 4)

    vmem = pl.BlockSpec(memory_space=pltpu.MemorySpace.VMEM)
    out = pl.pallas_call(
        rnn_kernel,
        out_shape=jax.ShapeDtypeStruct((Bp, C), jnp.float32),
        in_specs=[vmem] * 6,
        out_specs=vmem,
        cost_estimate=pl.CostEstimate(flops=flops,
                                      transcendentals=transcendentals,
                                      bytes_accessed=bytes_accessed),
    )(x_flat, wih_t, whh_t, b, wlin_t, blin2)
    return out[:B]                                             # strip batch padding


def init_params(key, input_dim, h, num_classes=5):
    # Deterministic init mimicking PyTorch's uniform(-1/sqrt(h), 1/sqrt(h)).
    ks = jax.random.split(key, 6)
    bound = 1.0 / jnp.sqrt(jnp.float32(h))
    u = lambda k, shape: jax.random.uniform(k, shape, jnp.float32, -bound, bound)
    wih = u(ks[0], (h, input_dim))
    whh = u(ks[1], (h, h))
    bih = u(ks[2], (h,))
    bhh = u(ks[3], (h,))
    wlin = u(ks[4], (num_classes, h))
    blin = u(ks[5], (num_classes,))
    return wih, whh, bih, bhh, wlin, blin


if __name__ == "__main__":
    key = jax.random.PRNGKey(0)
    T, B, D, H = 8, 2, 16, 32
    kx, kp = jax.random.split(key)
    inputs = jax.random.normal(kx, (T, B, D), jnp.float32)
    params = init_params(kp, D, H)

    out = jax.block_until_ready(rnn_forward(inputs, params))
    assert out.shape == (B, 5)

    # Log-softmax rows must sum to 1 in prob space (holds regardless of matmul precision).
    probs_sum = jnp.sum(jnp.exp(out), axis=1)
    assert bool(jnp.all(jnp.abs(probs_sum - 1.0) < 1e-4))

    wih, whh, bih, bhh, wlin, blin = params

    # Precision-matched reference: same bf16-operand / f32-accumulate math as the kernel.
    xb = inputs.astype(jnp.bfloat16)
    wih_b = wih.T.astype(jnp.bfloat16)
    whh_b = whh.T.astype(jnp.bfloat16)
    h_ref = jnp.zeros((B, H), jnp.float32)
    for t in range(T):
        xh_t = jnp.dot(xb[t], wih_b, preferred_element_type=jnp.float32) + (bih + bhh)
        h_ref = jnp.tanh(jnp.dot(h_ref.astype(jnp.bfloat16), whh_b,
                                 preferred_element_type=jnp.float32) + xh_t)
    ref_matched = jax.nn.log_softmax(h_ref @ wlin.T + blin, axis=1)
    assert bool(jnp.all(jnp.abs(out - ref_matched) < 2e-2))

    # Full-f32 (PyTorch-semantics) reference; looser tolerance since the kernel feeds the
    # MXU bf16 operands for the recurrence.
    h32 = jnp.zeros((B, H), jnp.float32)
    for t in range(T):
        h32 = jnp.tanh(inputs[t] @ wih.T + bih + h32 @ whh.T + bhh)
    ref_f32 = jax.nn.log_softmax(h32 @ wlin.T + blin, axis=1)
    assert bool(jnp.all(jnp.abs(out - ref_f32) < 1e-1))

    print("KERNEL_OK")
</pallas_src>

<mosaic_0001>
module attributes {stable_mosaic.version = 11 : i64} {
  func.func @rnn_kernel(%arg0: memref<64x16xbf16, #tpu.memory_space<vmem>>, %arg1: memref<16x32xbf16, #tpu.memory_space<vmem>>, %arg2: memref<32x32xbf16, #tpu.memory_space<vmem>>, %arg3: memref<1x32xf32, #tpu.memory_space<vmem>>, %arg4: memref<32x5xf32, #tpu.memory_space<vmem>>, %arg5: memref<1x5xf32, #tpu.memory_space<vmem>>, %arg6: memref<8x5xf32, #tpu.memory_space<vmem>>) attributes {dimension_semantics = [], scalar_prefetch = 0 : i64, scratch_operands = 0 : i64, tpu.core_type = #tpu.core_type<tc>} {
    %c0 = arith.constant 0 : index
    %c0_0 = arith.constant 0 : index
    %0 = vector.load %arg0[%c0, %c0_0] : memref<64x16xbf16, #tpu.memory_space<vmem>>, vector<64x16xbf16>
    %c0_1 = arith.constant 0 : index
    %c0_2 = arith.constant 0 : index
    %1 = vector.load %arg1[%c0_1, %c0_2] : memref<16x32xbf16, #tpu.memory_space<vmem>>, vector<16x32xbf16>
    %cst = arith.constant dense<0.000000e+00> : vector<64x32xf32>
    %2 = tpu.matmul %0, %1, %cst {dimension_numbers = #tpu.dot_dimension_numbers<[1], [0], [0], [1], [0, 0, 1, 1], [], []>} : vector<64x16xbf16>, vector<16x32xbf16>, vector<64x32xf32> -> vector<64x32xf32>
    %c0_3 = arith.constant 0 : index
    %c0_4 = arith.constant 0 : index
    %3 = vector.load %arg3[%c0_3, %c0_4] : memref<1x32xf32, #tpu.memory_space<vmem>>, vector<1x32xf32>
    %4 = vector.broadcast %3 : vector<1x32xf32> to vector<64x32xf32>
    %5 = arith.addf %2, %4 : vector<64x32xf32>
    %c0_5 = arith.constant 0 : index
    %c0_6 = arith.constant 0 : index
    %6 = vector.load %arg2[%c0_5, %c0_6] : memref<32x32xbf16, #tpu.memory_space<vmem>>, vector<32x32xbf16>
    %cst_7 = arith.constant 0.000000e+00 : f32
    %7 = vector.broadcast %cst_7 : f32 to vector<8x32xf32>
    %8 = arith.truncf %7 : vector<8x32xf32> to vector<8x32xbf16>
    %cst_8 = arith.constant dense<0.000000e+00> : vector<8x32xf32>
    %9 = tpu.matmul %8, %6, %cst_8 {dimension_numbers = #tpu.dot_dimension_numbers<[1], [0], [0], [1], [0, 0, 1, 1], [], []>} : vector<8x32xbf16>, vector<32x32xbf16>, vector<8x32xf32> -> vector<8x32xf32>
    %10 = vector.extract_strided_slice %5 {offsets = [0, 0], sizes = [8, 32], strides = [1, 1]} : vector<64x32xf32> to vector<8x32xf32>
    %11 = arith.addf %9, %10 : vector<8x32xf32>
    %12 = math.tanh %11 : vector<8x32xf32>
    %13 = arith.truncf %12 : vector<8x32xf32> to vector<8x32xbf16>
    %cst_9 = arith.constant dense<0.000000e+00> : vector<8x32xf32>
    %14 = tpu.matmul %13, %6, %cst_9 {dimension_numbers = #tpu.dot_dimension_numbers<[1], [0], [0], [1], [0, 0, 1, 1], [], []>} : vector<8x32xbf16>, vector<32x32xbf16>, vector<8x32xf32> -> vector<8x32xf32>
    %15 = vector.extract_strided_slice %5 {offsets = [8, 0], sizes = [8, 32], strides = [1, 1]} : vector<64x32xf32> to vector<8x32xf32>
    %16 = arith.addf %14, %15 : vector<8x32xf32>
    %17 = math.tanh %16 : vector<8x32xf32>
    %18 = arith.truncf %17 : vector<8x32xf32> to vector<8x32xbf16>
    %cst_10 = arith.constant dense<0.000000e+00> : vector<8x32xf32>
    %19 = tpu.matmul %18, %6, %cst_10 {dimension_numbers = #tpu.dot_dimension_numbers<[1], [0], [0], [1], [0, 0, 1, 1], [], []>} : vector<8x32xbf16>, vector<32x32xbf16>, vector<8x32xf32> -> vector<8x32xf32>
    %20 = vector.extract_strided_slice %5 {offsets = [16, 0], sizes = [8, 32], strides = [1, 1]} : vector<64x32xf32> to vector<8x32xf32>
    %21 = arith.addf %19, %20 : vector<8x32xf32>
    %22 = math.tanh %21 : vector<8x32xf32>
    %23 = arith.truncf %22 : vector<8x32xf32> to vector<8x32xbf16>
    %cst_11 = arith.constant dense<0.000000e+00> : vector<8x32xf32>
    %24 = tpu.matmul %23, %6, %cst_11 {dimension_numbers = #tpu.dot_dimension_numbers<[1], [0], [0], [1], [0, 0, 1, 1], [], []>} : vector<8x32xbf16>, vector<32x32xbf16>, vector<8x32xf32> -> vector<8x32xf32>
    %25 = vector.extract_strided_slice %5 {offsets = [24, 0], sizes = [8, 32], strides = [1, 1]} : vector<64x32xf32> to vector<8x32xf32>
    %26 = arith.addf %24, %25 : vector<8x32xf32>
    %27 = math.tanh %26 : vector<8x32xf32>
    %28 = arith.truncf %27 : vector<8x32xf32> to vector<8x32xbf16>
    %cst_12 = arith.constant dense<0.000000e+00> : vector<8x32xf32>
    %29 = tpu.matmul %28, %6, %cst_12 {dimension_numbers = #tpu.dot_dimension_numbers<[1], [0], [0], [1], [0, 0, 1, 1], [], []>} : vector<8x32xbf16>, vector<32x32xbf16>, vector<8x32xf32> -> vector<8x32xf32>
    %30 = vector.extract_strided_slice %5 {offsets = [32, 0], sizes = [8, 32], strides = [1, 1]} : vector<64x32xf32> to vector<8x32xf32>
    %31 = arith.addf %29, %30 : vector<8x32xf32>
    %32 = math.tanh %31 : vector<8x32xf32>
    %33 = arith.truncf %32 : vector<8x32xf32> to vector<8x32xbf16>
    %cst_13 = arith.constant dense<0.000000e+00> : vector<8x32xf32>
    %34 = tpu.matmul %33, %6, %cst_13 {dimension_numbers = #tpu.dot_dimension_numbers<[1], [0], [0], [1], [0, 0, 1, 1], [], []>} : vector<8x32xbf16>, vector<32x32xbf16>, vector<8x32xf32> -> vector<8x32xf32>
    %35 = vector.extract_strided_slice %5 {offsets = [40, 0], sizes = [8, 32], strides = [1, 1]} : vector<64x32xf32> to vector<8x32xf32>
    %36 = arith.addf %34, %35 : vector<8x32xf32>
    %37 = math.tanh %36 : vector<8x32xf32>
    %38 = arith.truncf %37 : vector<8x32xf32> to vector<8x32xbf16>
    %cst_14 = arith.constant dense<0.000000e+00> : vector<8x32xf32>
    %39 = tpu.matmul %38, %6, %cst_14 {dimension_numbers = #tpu.dot_dimension_numbers<[1], [0], [0], [1], [0, 0, 1, 1], [], []>} : vector<8x32xbf16>, vector<32x32xbf16>, vector<8x32xf32> -> vector<8x32xf32>
    %40 = vector.extract_strided_slice %5 {offsets = [48, 0], sizes = [8, 32], strides = [1, 1]} : vector<64x32xf32> to vector<8x32xf32>
    %41 = arith.addf %39, %40 : vector<8x32xf32>
    %42 = math.tanh %41 : vector<8x32xf32>
    %43 = arith.truncf %42 : vector<8x32xf32> to vector<8x32xbf16>
    %cst_15 = arith.constant dense<0.000000e+00> : vector<8x32xf32>
    %44 = tpu.matmul %43, %6, %cst_15 {dimension_numbers = #tpu.dot_dimension_numbers<[1], [0], [0], [1], [0, 0, 1, 1], [], []>} : vector<8x32xbf16>, vector<32x32xbf16>, vector<8x32xf32> -> vector<8x32xf32>
    %45 = vector.extract_strided_slice %5 {offsets = [56, 0], sizes = [8, 32], strides = [1, 1]} : vector<64x32xf32> to vector<8x32xf32>
    %46 = arith.addf %44, %45 : vector<8x32xf32>
    %47 = math.tanh %46 : vector<8x32xf32>
    %c0_16 = arith.constant 0 : index
    %c0_17 = arith.constant 0 : index
    %48 = vector.load %arg4[%c0_16, %c0_17] : memref<32x5xf32, #tpu.memory_space<vmem>>, vector<32x5xf32>
    %cst_18 = arith.constant dense<0.000000e+00> : vector<8x5xf32>
    %49 = tpu.matmul %47, %48, %cst_18 {dimension_numbers = #tpu.dot_dimension_numbers<[1], [0], [0], [1], [0, 0, 1, 1], [], []>} : vector<8x32xf32>, vector<32x5xf32>, vector<8x5xf32> -> vector<8x5xf32>
    %c0_19 = arith.constant 0 : index
    %c0_20 = arith.constant 0 : index
    %50 = vector.load %arg5[%c0_19, %c0_20] : memref<1x5xf32, #tpu.memory_space<vmem>>, vector<1x5xf32>
    %51 = vector.broadcast %50 : vector<1x5xf32> to vector<8x5xf32>
    %52 = arith.addf %49, %51 : vector<8x5xf32>
    %cst_21 = arith.constant dense<0xFF800000> : vector<8xf32>
    %53 = vector.multi_reduction <maximumf>, %52, %cst_21 [1] : vector<8x5xf32> to vector<8xf32>
    %54 = vector.shape_cast %53 : vector<8xf32> to vector<8x1xf32>
    %55 = vector.broadcast %54 : vector<8x1xf32> to vector<8x5xf32>
    %56 = arith.subf %52, %55 : vector<8x5xf32>
    %57 = math.exp %56 : vector<8x5xf32>
    %cst_22 = arith.constant dense<0.000000e+00> : vector<8xf32>
    %58 = vector.multi_reduction <add>, %57, %cst_22 [1] : vector<8x5xf32> to vector<8xf32>
    %59 = vector.shape_cast %58 : vector<8xf32> to vector<8x1xf32>
    %60 = math.log %59 : vector<8x1xf32>
    %61 = vector.broadcast %60 : vector<8x1xf32> to vector<8x5xf32>
    %62 = arith.subf %56, %61 : vector<8x5xf32>
    %c0_23 = arith.constant 0 : index
    %c0_24 = arith.constant 0 : index
    %63 = vector.load %arg6[%c0_23, %c0_24] : memref<8x5xf32, #tpu.memory_space<vmem>>, vector<8x5xf32>
    tpu.vector_store %arg6[%c0_23, %c0_24], %62 {strides = array<i32>} : memref<8x5xf32, #tpu.memory_space<vmem>>, vector<8x5xf32>,
    return
  }
}

</mosaic_0001>

<llo_original>
// kernel: tpu_custom_call.1
$region0: #{tpu_custom_call.1}
  #allocation0 [shape = 'u32[]', space=smem, size = 0x4, offset = 0x4, fixed_abs, tag = 'smem constant byte address 0x4 - core index']
  #allocation1 [shape = 'u32[144,128]{1,0:T(1,128)}', space=vmem, size = 0x12000, scoped, tag = 'internal scratch']
  %s0 = inlined_call_operand.vmem [shape: bf16[64,16], index: 0, kind: input, shape index: {}]
  %s1 = inlined_call_operand.vmem [shape: bf16[16,32], index: 1, kind: input, shape index: {}]
  %s2 = inlined_call_operand.vmem [shape: bf16[32,32], index: 2, kind: input, shape index: {}]
  %s3 = inlined_call_operand.vmem [shape: f32[1,32], index: 3, kind: input, shape index: {}]
  %s4 = inlined_call_operand.vmem [shape: f32[32,5], index: 4, kind: input, shape index: {}]
  %s5 = inlined_call_operand.vmem [shape: f32[1,5], index: 5, kind: input, shape index: {}]
  %s6 = inlined_call_operand.hbm [shape: f32[8,5], index: 6, kind: output, shape index: {}]
  %s7 = sld [smem:[#allocation0]]
  $region34: #{tpu_custom_call.1} parent=0
    _
  %s9 = ssub.s32 1, %s7
  %s10 = scalar_select 0, %s9, %s7
  $region1: #{tpu_custom_call.1} parent=0
    #allocation2 [shape = 'u8[4096]{0}', space=vmem, size = 0x1000, scoped, tag = 'output window, operand 0, single buffered']
    #allocation3 [shape = 's32[1]{0}', space=sflag, size = 0x4, scoped, tag = 'scoped memory for tpu_custom_call.1']
    %11 = vsyncpa [#allocation3], 0
    // Predicated region
    $region2: #{tpu_custom_call.1} parent=1 // pred_check
      _
    $region3: #{tpu_custom_call.1} parent=1 // pred_check_branch
      %13 = sbr.rel (0) target = $region5
    $region4: #{tpu_custom_call.1} parent=1 // pred_region
      _
    $region5: #{tpu_custom_call.1} parent=1 // pred_fallthru
      _
    // Predicated region
    $region6: #{tpu_custom_call.1} parent=1 // pred_check
      _
    $region7: #{tpu_custom_call.1} parent=1 // pred_check_branch
      %15 = sbr.rel (0) target = $region9
    $region8: #{tpu_custom_call.1} parent=1 // pred_region
      _
    $region9: #{tpu_custom_call.1} parent=1 // pred_fallthru
      _
    // Predicated region
    $region10: #{tpu_custom_call.1} parent=1 // pred_check
      _
    $region11: #{tpu_custom_call.1} parent=1 // pred_check_branch
      %17 = sbr.rel (0) target = $region13
    $region12: #{tpu_custom_call.1} parent=1 // pred_region
      _
    $region13: #{tpu_custom_call.1} parent=1 // pred_fallthru
      _
    // Predicated region
    $region14: #{tpu_custom_call.1} parent=1 // pred_check
      _
    $region15: #{tpu_custom_call.1} parent=1 // pred_check_branch
      %19 = sbr.rel (0) target = $region17
    $region16: #{tpu_custom_call.1} parent=1 // pred_region
      _
    $region17: #{tpu_custom_call.1} parent=1 // pred_fallthru
      _
    // Predicated region
    $region18: #{tpu_custom_call.1} parent=1 // pred_check
      _
    $region19: #{tpu_custom_call.1} parent=1 // pred_check_branch
      %21 = sbr.rel (0) target = $region21
    $region20: #{tpu_custom_call.1} parent=1 // pred_region
      _
    $region21: #{tpu_custom_call.1} parent=1 // pred_fallthru
      _
    // Predicated region
    $region22: #{tpu_custom_call.1} parent=1 // pred_check
      _
    $region23: #{tpu_custom_call.1} parent=1 // pred_check_branch
      %23 = sbr.rel (0) target = $region25
    $region24: #{tpu_custom_call.1} parent=1 // pred_region
      _
    $region25: #{tpu_custom_call.1} parent=1 // pred_fallthru
      _
    %v25 = vld [vmem:[%s0] sm:$0xf]
    %v26 = vld [vmem:[%s0 + $0x4] sm:$0xf]
    %v27 = vld [vmem:[%s0 + $0x8] sm:$0xf]
    %v28 = vld [vmem:[%s0 + $0xc] sm:$0xf]
    %v29 = vld [vmem:[%s0 + $0x10] sm:$0xf]
    %v30 = vld [vmem:[%s0 + $0x14] sm:$0xf]
    %v31 = vld [vmem:[%s0 + $0x18] sm:$0xf]
    %v32 = vld [vmem:[%s0 + $0x1c] sm:$0xf]
    %v33 = vld [vmem:[%s1] sm:$0xf]
    %v34 = vld [vmem:[%s1 + $0x4] sm:$0xf]
    %v35 = vld [vmem:[%s3] sm:$0x1]
    %v37 = vlaneseq
    %v38 = vshrl.u32 %v37, 7
    %v39 = vsub.s32 0, %v38
    %v40 = vrot.slane %v35, %v39
    %v50 = vunpack.c.l.b16 %v25
    %v51 = vunpack.c.l.b16 %v26
    %v52 = vunpack.c.l.b16 %v27
    %v53 = vunpack.c.l.b16 %v28
    %v54 = vunpack.c.l.b16 %v29
    %v55 = vunpack.c.l.b16 %v30
    %v56 = vunpack.c.l.b16 %v31
    %v57 = vunpack.c.l.b16 %v32
    %v58 = vpack.c.b16 %v51, %v50
    %v59 = vpack.c.b16 %v53, %v52
    %v60 = vpack.c.b16 %v55, %v54
    %v61 = vpack.c.b16 %v57, %v56
    %v64 = vunpack.c.l.b16 %v33
    %v65 = vunpack.c.l.b16 %v34
    %v66 = vpack.c.b16 %v65, %v64
    %vm68 = vcmask 130048
    %v70 = vsel %vm68, %v58, 0
    %v73 = vsel %vm68, %v59, 0
    %v76 = vsel %vm68, %v60, 0
    %v79 = vsel %vm68, %v61, 0
    %81 = vmatprep.subr.bf16.mxu0 0
    %82 = vmatpush1.bf16.msra.mxu0 0
    %83 = vmatprep.subr.bf16.mxu0 0
    %84 = vmatpush1.bf16.msra.mxu0 0
    %85 = vmatprep.subr.bf16.mxu0 0
    %86 = vmatpush1.bf16.msra.mxu0 0
    %87 = vmatprep.subr.bf16.mxu0 0
    %88 = vmatpush1.bf16.msra.mxu0 0
    %89 = vmatprep.subr.bf16.mxu0 0
    %90 = vmatpush1.bf16.msra.mxu0 0
    %91 = vmatprep.subr.bf16.mxu0 0
    %92 = vmatpush1.bf16.msra.mxu0 0
    %93 = vmatprep.subr.bf16.mxu0 0
    %94 = vmatpush1.bf16.msra.mxu0 0
    %95 = vmatprep.subr.bf16.mxu0 0
    %96 = vmatpush1.bf16.msra.mxu0 %v66
    %97 = vmatprep.subr.bf16.mxu0 0
    %98 = vmatpush2.bf16.msra.mxu0 0
    %99 = vmatprep.subr.bf16.mxu0 0
    %100 = vmatpush2.bf16.msra.mxu0 0
    %101 = vmatprep.subr.bf16.mxu0 0
    %102 = vmatpush2.bf16.msra.mxu0 0
    %103 = vmatprep.subr.bf16.mxu0 0
    %104 = vmatpush2.bf16.msra.mxu0 0
    %105 = vmatprep.subr.bf16.mxu0 0
    %106 = vmatpush2.bf16.msra.mxu0 0
    %107 = vmatprep.subr.bf16.mxu0 0
    %108 = vmatpush2.bf16.msra.mxu0 0
    %109 = vmatprep.subr.bf16.mxu0 0
    %110 = vmatpush2.bf16.msra.mxu0 0
    %111 = vmatprep.subr.bf16.mxu0 0
    %112 = vmatpush2.bf16.msra.mxu0 0
    %113 = vmatprep.mubr.bf16.mxu0 0
    %114 = vmatmul.mubr.bf16.gmra.mxu0 %v70
    %v115 = vpop.f32.mrf.mxu0
    %v116 = vadd.f32 %v40, %v115
    %v117 = vpop.f32.mrf.mxu0
    %v118 = vpop.f32.mrf.mxu0
    %v119 = vadd.f32 %v40, %v118
    %v120 = vpop.f32.mrf.mxu0
    %121 = vmatprep.mubr.bf16.mxu0 0
    %122 = vmatmul.mubr.bf16.gmra.mxu0 %v73
    %v123 = vpop.f32.mrf.mxu0
    %v124 = vadd.f32 %v40, %v123
    %v125 = vpop.f32.mrf.mxu0
    %v126 = vpop.f32.mrf.mxu0
    %v127 = vadd.f32 %v40, %v126
    %v128 = vpop.f32.mrf.mxu0
    %129 = vmatprep.mubr.bf16.mxu0 0
    %130 = vmatmul.mubr.bf16.gmra.mxu0 %v76
    %v131 = vpop.f32.mrf.mxu0
    %v132 = vadd.f32 %v40, %v131
    %v133 = vpop.f32.mrf.mxu0
    %v134 = vpop.f32.mrf.mxu0
    %v135 = vadd.f32 %v40, %v134
    %v136 = vpop.f32.mrf.mxu0
    %137 = vmatprep.mubr.bf16.mxu0 0
    %138 = vmatmul.mubr.bf16.gmra.mxu0 %v79
    %v139 = vpop.f32.mrf.mxu0
    %v140 = vadd.f32 %v40, %v139
    %v141 = vpop.f32.mrf.mxu0
    %v142 = vpop.f32.mrf.mxu0
    %v143 = vadd.f32 %v40, %v142
    %v144 = vpop.f32.mrf.mxu0
    %145 = vdwg.mxu0
    %v146 = vld [vmem:[%s2] sm:$0xf]
    %v147 = vld [vmem:[%s2 + $0x4] sm:$0xf]
    %v148 = vld [vmem:[%s2 + $0x8] sm:$0xf]
    %v149 = vld [vmem:[%s2 + $0xc] sm:$0xf]
    %v154 = vunpack.c.l.b16 %v146
    %v155 = vunpack.c.l.b16 %v147
    %v156 = vunpack.c.l.b16 %v148
    %v157 = vunpack.c.l.b16 %v149
    %v158 = vpack.c.b16 %v155, %v154
    %v159 = vpack.c.b16 %v157, %v156
    %vm162 = vcmask 261120
    %v164 = vsel %vm162, 0, 0
    %166 = vmatprep.subr.bf16.mxu0 0
    %167 = vmatpush1.bf16.msra.mxu0 0
    %168 = vmatprep.subr.bf16.mxu0 0
    %169 = vmatpush1.bf16.msra.mxu0 0
    %170 = vmatprep.subr.bf16.mxu0 0
    %171 = vmatpush1.bf16.msra.mxu0 0
    %172 = vmatprep.subr.bf16.mxu0 0
    %173 = vmatpush1.bf16.msra.mxu0 0
    %174 = vmatprep.subr.bf16.mxu0 0
    %175 = vmatpush1.bf16.msra.mxu0 0
    %176 = vmatprep.subr.bf16.mxu0 0
    %177 = vmatpush1.bf16.msra.mxu0 0
    %178 = vmatprep.subr.bf16.mxu0 0
    %179 = vmatpush1.bf16.msra.mxu0 %v159
    %180 = vmatprep.subr.bf16.mxu0 0
    %181 = vmatpush1.bf16.msra.mxu0 %v158
    %182 = vmatprep.subr.bf16.mxu0 0
    %183 = vmatpush2.bf16.msra.mxu0 0
    %184 = vmatprep.subr.bf16.mxu0 0
    %185 = vmatpush2.bf16.msra.mxu0 0
    %186 = vmatprep.subr.bf16.mxu0 0
    %187 = vmatpush2.bf16.msra.mxu0 0
    %188 = vmatprep.subr.bf16.mxu0 0
    %189 = vmatpush2.bf16.msra.mxu0 0
    %190 = vmatprep.subr.bf16.mxu0 0
    %191 = vmatpush2.bf16.msra.mxu0 0
    %192 = vmatprep.subr.bf16.mxu0 0
    %193 = vmatpush2.bf16.msra.mxu0 0
    %194 = vmatprep.subr.bf16.mxu0 0
    %195 = vmatpush2.bf16.msra.mxu0 0
    %196 = vmatprep.subr.bf16.mxu0 0
    %197 = vmatpush2.bf16.msra.mxu0 0
    %198 = vmatprep.mubr.bf16.mxu0 0
    %199 = vmatmul.mubr.bf16.gmra.mxu0 %v164
    %v200 = vpop.f32.mrf.mxu0
    %v201 = vadd.f32 %v116, %v200
    %v202 = vpop.f32.mrf.mxu0
    %v203 = vpop.f32.mrf.mxu0
    %v204 = vpop.f32.mrf.mxu0
    %205 = vdwg.mxu0
    %v206 = vtanh.pop %v201
    %v207 = vpack.c.bf16 %v206, %v206
    %v209 = vsel %vm162, %v207, 0
    %211 = vmatprep.subr.bf16.mxu0 0
    %212 = vmatpush1.bf16.msra.mxu0 0
    %213 = vmatprep.subr.bf16.mxu0 0
    %214 = vmatpush1.bf16.msra.mxu0 0
    %215 = vmatprep.subr.bf16.mxu0 0
    %216 = vmatpush1.bf16.msra.mxu0 0
    %217 = vmatprep.subr.bf16.mxu0 0
    %218 = vmatpush1.bf16.msra.mxu0 0
    %219 = vmatprep.subr.bf16.mxu0 0
    %220 = vmatpush1.bf16.msra.mxu0 0
    %221 = vmatprep.subr.bf16.mxu0 0
    %222 = vmatpush1.bf16.msra.mxu0 0
    %223 = vmatprep.subr.bf16.mxu0 0
    %224 = vmatpush1.bf16.msra.mxu0 %v159
    %225 = vmatprep.subr.bf16.mxu0 0
    %226 = vmatpush1.bf16.msra.mxu0 %v158
    %227 = vmatprep.subr.bf16.mxu0 0
    %228 = vmatpush2.bf16.msra.mxu0 0
    %229 = vmatprep.subr.bf16.mxu0 0
    %230 = vmatpush2.bf16.msra.mxu0 0
    %231 = vmatprep.subr.bf16.mxu0 0
    %232 = vmatpush2.bf16.msra.mxu0 0
    %233 = vmatprep.subr.bf16.mxu0 0
    %234 = vmatpush2.bf16.msra.mxu0 0
    %235 = vmatprep.subr.bf16.mxu0 0
    %236 = vmatpush2.bf16.msra.mxu0 0
    %237 = vmatprep.subr.bf16.mxu0 0
    %238 = vmatpush2.bf16.msra.mxu0 0
    %239 = vmatprep.subr.bf16.mxu0 0
    %240 = vmatpush2.bf16.msra.mxu0 0
    %241 = vmatprep.subr.bf16.mxu0 0
    %242 = vmatpush2.bf16.msra.mxu0 0
    %243 = vmatprep.mubr.bf16.mxu0 0
    %244 = vmatmul.mubr.bf16.gmra.mxu0 %v209
    %v245 = vpop.f32.mrf.mxu0
    %v246 = vadd.f32 %v119, %v245
    %v247 = vpop.f32.mrf.mxu0
    %v248 = vpop.f32.mrf.mxu0
    %v249 = vpop.f32.mrf.mxu0
    %250 = vdwg.mxu0
    %v251 = vtanh.pop %v246
    %v252 = vpack.c.bf16 %v251, %v251
    %v254 = vsel %vm162, %v252, 0
    %256 = vmatprep.subr.bf16.mxu0 0
    %257 = vmatpush1.bf16.msra.mxu0 0
    %258 = vmatprep.subr.bf16.mxu0 0
    %259 = vmatpush1.bf16.msra.mxu0 0
    %260 = vmatprep.subr.bf16.mxu0 0
    %261 = vmatpush1.bf16.msra.mxu0 0
    %262 = vmatprep.subr.bf16.mxu0 0
    %263 = vmatpush1.bf16.msra.mxu0 0
    %264 = vmatprep.subr.bf16.mxu0 0
    %265 = vmatpush1.bf16.msra.mxu0 0
    %266 = vmatprep.subr.bf16.mxu0 0
    %267 = vmatpush1.bf16.msra.mxu0 0
    %268 = vmatprep.subr.bf16.mxu0 0
    %269 = vmatpush1.bf16.msra.mxu0 %v159
    %270 = vmatprep.subr.bf16.mxu0 0
    %271 = vmatpush1.bf16.msra.mxu0 %v158
    %272 = vmatprep.subr.bf16.mxu0 0
    %273 = vmatpush2.bf16.msra.mxu0 0
    %274 = vmatprep.subr.bf16.mxu0 0
    %275 = vmatpush2.bf16.msra.mxu0 0
    %276 = vmatprep.subr.bf16.mxu0 0
    %277 = vmatpush2.bf16.msra.mxu0 0
    %278 = vmatprep.subr.bf16.mxu0 0
    %279 = vmatpush2.bf16.msra.mxu0 0
    %280 = vmatprep.subr.bf16.mxu0 0
    %281 = vmatpush2.bf16.msra.mxu0 0
    %282 = vmatprep.subr.bf16.mxu0 0
    %283 = vmatpush2.bf16.msra.mxu0 0
    %284 = vmatprep.subr.bf16.mxu0 0
    %285 = vmatpush2.bf16.msra.mxu0 0
    %286 = vmatprep.subr.bf16.mxu0 0
    %287 = vmatpush2.bf16.msra.mxu0 0
    %288 = vmatprep.mubr.bf16.mxu0 0
    %289 = vmatmul.mubr.bf16.gmra.mxu0 %v254
    %v290 = vpop.f32.mrf.mxu0
    %v291 = vadd.f32 %v124, %v290
    %v292 = vpop.f32.mrf.mxu0
    %v293 = vpop.f32.mrf.mxu0
    %v294 = vpop.f32.mrf.mxu0
    %295 = vdwg.mxu0
    %v296 = vtanh.pop %v291
    %v297 = vpack.c.bf16 %v296, %v296
    %v299 = vsel %vm162, %v297, 0
    %301 = vmatprep.subr.bf16.mxu0 0
    %302 = vmatpush1.bf16.msra.mxu0 0
    %303 = vmatprep.subr.bf16.mxu0 0
    %304 = vmatpush1.bf16.msra.mxu0 0
    %305 = vmatprep.subr.bf16.mxu0 0
    %306 = vmatpush1.bf16.msra.mxu0 0
    %307 = vmatprep.subr.bf16.mxu0 0
    %308 = vmatpush1.bf16.msra.mxu0 0
    %309 = vmatprep.subr.bf16.mxu0 0
    %310 = vmatpush1.bf16.msra.mxu0 0
    %311 = vmatprep.subr.bf16.mxu0 0
    %312 = vmatpush1.bf16.msra.mxu0 0
    %313 = vmatprep.subr.bf16.mxu0 0
    %314 = vmatpush1.bf16.msra.mxu0 %v159
    %315 = vmatprep.subr.bf16.mxu0 0
    %316 = vmatpush1.bf16.msra.mxu0 %v158
    %317 = vmatprep.subr.bf16.mxu0 0
    %318 = vmatpush2.bf16.msra.mxu0 0
    %319 = vmatprep.subr.bf16.mxu0 0
    %320 = vmatpush2.bf16.msra.mxu0 0
    %321 = vmatprep.subr.bf16.mxu0 0
    %322 = vmatpush2.bf16.msra.mxu0 0
    %323 = vmatprep.subr.bf16.mxu0 0
    %324 = vmatpush2.bf16.msra.mxu0 0
    %325 = vmatprep.subr.bf16.mxu0 0
    %326 = vmatpush2.bf16.msra.mxu0 0
    %327 = vmatprep.subr.bf16.mxu0 0
    %328 = vmatpush2.bf16.msra.mxu0 0
    %329 = vmatprep.subr.bf16.mxu0 0
    %330 = vmatpush2.bf16.msra.mxu0 0
    %331 = vmatprep.subr.bf16.mxu0 0
    %332 = vmatpush2.bf16.msra.mxu0 0
    %333 = vmatprep.mubr.bf16.mxu0 0
    %334 = vmatmul.mubr.bf16.gmra.mxu0 %v299
    %v335 = vpop.f32.mrf.mxu0
    %v336 = vadd.f32 %v127, %v335
    %v337 = vpop.f32.mrf.mxu0
    %v338 = vpop.f32.mrf.mxu0
    %v339 = vpop.f32.mrf.mxu0
    %340 = vdwg.mxu0
    %v341 = vtanh.pop %v336
    %v342 = vpack.c.bf16 %v341, %v341
    %v344 = vsel %vm162, %v342, 0
    %346 = vmatprep.subr.bf16.mxu0 0
    %347 = vmatpush1.bf16.msra.mxu0 0
    %348 = vmatprep.subr.bf16.mxu0 0
    %349 = vmatpush1.bf16.msra.mxu0 0
    %350 = vmatprep.subr.bf16.mxu0 0
    %351 = vmatpush1.bf16.msra.mxu0 0
    %352 = vmatprep.subr.bf16.mxu0 0
    %353 = vmatpush1.bf16.msra.mxu0 0
    %354 = vmatprep.subr.bf16.mxu0 0
    %355 = vmatpush1.bf16.msra.mxu0 0
    %356 = vmatprep.subr.bf16.mxu0 0
    %357 = vmatpush1.bf16.msra.mxu0 0
    %358 = vmatprep.subr.bf16.mxu0 0
    %359 = vmatpush1.bf16.msra.mxu0 %v159
    %360 = vmatprep.subr.bf16.mxu0 0
    %361 = vmatpush1.bf16.msra.mxu0 %v158
    %362 = vmatprep.subr.bf16.mxu0 0
    %363 = vmatpush2.bf16.msra.mxu0 0
    %364 = vmatprep.subr.bf16.mxu0 0
    %365 = vmatpush2.bf16.msra.mxu0 0
    %366 = vmatprep.subr.bf16.mxu0 0
    %367 = vmatpush2.bf16.msra.mxu0 0
    %368 = vmatprep.subr.bf16.mxu0 0
    %369 = vmatpush2.bf16.msra.mxu0 0
    %370 = vmatprep.subr.bf16.mxu0 0
    %371 = vmatpush2.bf16.msra.mxu0 0
    %372 = vmatprep.subr.bf16.mxu0 0
    %373 = vmatpush2.bf16.msra.mxu0 0
    %374 = vmatprep.subr.bf16.mxu0 0
    %375 = vmatpush2.bf16.msra.mxu0 0
    %376 = vmatprep.subr.bf16.mxu0 0
    %377 = vmatpush2.bf16.msra.mxu0 0
    %378 = vmatprep.mubr.bf16.mxu0 0
    %379 = vmatmul.mubr.bf16.gmra.mxu0 %v344
    %v380 = vpop.f32.mrf.mxu0
    %v381 = vadd.f32 %v132, %v380
    %v382 = vpop.f32.mrf.mxu0
    %v383 = vpop.f32.mrf.mxu0
    %v384 = vpop.f32.mrf.mxu0
    %385 = vdwg.mxu0
    %v386 = vtanh.pop %v381
    %v387 = vpack.c.bf16 %v386, %v386
    %v389 = vsel %vm162, %v387, 0
    %391 = vmatprep.subr.bf16.mxu0 0
    %392 = vmatpush1.bf16.msra.mxu0 0
    %393 = vmatprep.subr.bf16.mxu0 0
    %394 = vmatpush1.bf16.msra.mxu0 0
    %395 = vmatprep.subr.bf16.mxu0 0
    %396 = vmatpush1.bf16.msra.mxu0 0
    %397 = vmatprep.subr.bf16.mxu0 0
    %398 = vmatpush1.bf16.msra.mxu0 0
    %399 = vmatprep.subr.bf16.mxu0 0
    %400 = vmatpush1.bf16.msra.mxu0 0
    %401 = vmatprep.subr.bf16.mxu0 0
    %402 = vmatpush1.bf16.msra.mxu0 0
    %403 = vmatprep.subr.bf16.mxu0 0
    %404 = vmatpush1.bf16.msra.mxu0 %v159
    %405 = vmatprep.subr.bf16.mxu0 0
    %406 = vmatpush1.bf16.msra.mxu0 %v158
    %407 = vmatprep.subr.bf16.mxu0 0
    %408 = vmatpush2.bf16.msra.mxu0 0
    %409 = vmatprep.subr.bf16.mxu0 0
    %410 = vmatpush2.bf16.msra.mxu0 0
    %411 = vmatprep.subr.bf16.mxu0 0
    %412 = vmatpush2.bf16.msra.mxu0 0
    %413 = vmatprep.subr.bf16.mxu0 0
    %414 = vmatpush2.bf16.msra.mxu0 0
    %415 = vmatprep.subr.bf16.mxu0 0
    %416 = vmatpush2.bf16.msra.mxu0 0
    %417 = vmatprep.subr.bf16.mxu0 0
    %418 = vmatpush2.bf16.msra.mxu0 0
    %419 = vmatprep.subr.bf16.mxu0 0
    %420 = vmatpush2.bf16.msra.mxu0 0
    %421 = vmatprep.subr.bf16.mxu0 0
    %422 = vmatpush2.bf16.msra.mxu0 0
    %423 = vmatprep.mubr.bf16.mxu0 0
    %424 = vmatmul.mubr.bf16.gmra.mxu0 %v389
    %v425 = vpop.f32.mrf.mxu0
    %v426 = vadd.f32 %v135, %v425
    %v427 = vpop.f32.mrf.mxu0
    %v428 = vpop.f32.mrf.mxu0
    %v429 = vpop.f32.mrf.mxu0
    %430 = vdwg.mxu0
    %v431 = vtanh.pop %v426
    %v432 = vpack.c.bf16 %v431, %v431
    %v434 = vsel %vm162, %v432, 0
    %436 = vmatprep.subr.bf16.mxu0 0
    %437 = vmatpush1.bf16.msra.mxu0 0
    %438 = vmatprep.subr.bf16.mxu0 0
    %439 = vmatpush1.bf16.msra.mxu0 0
    %440 = vmatprep.subr.bf16.mxu0 0
    %441 = vmatpush1.bf16.msra.mxu0 0
    %442 = vmatprep.subr.bf16.mxu0 0
    %443 = vmatpush1.bf16.msra.mxu0 0
    %444 = vmatprep.subr.bf16.mxu0 0
    %445 = vmatpush1.bf16.msra.mxu0 0
    %446 = vmatprep.subr.bf16.mxu0 0
    %447 = vmatpush1.bf16.msra.mxu0 0
    %448 = vmatprep.subr.bf16.mxu0 0
    %449 = vmatpush1.bf16.msra.mxu0 %v159
    %450 = vmatprep.subr.bf16.mxu0 0
    %451 = vmatpush1.bf16.msra.mxu0 %v158
    %452 = vmatprep.subr.bf16.mxu0 0
    %453 = vmatpush2.bf16.msra.mxu0 0
    %454 = vmatprep.subr.bf16.mxu0 0
    %455 = vmatpush2.bf16.msra.mxu0 0
    %456 = vmatprep.subr.bf16.mxu0 0
    %457 = vmatpush2.bf16.msra.mxu0 0
    %458 = vmatprep.subr.bf16.mxu0 0
    %459 = vmatpush2.bf16.msra.mxu0 0
    %460 = vmatprep.subr.bf16.mxu0 0
    %461 = vmatpush2.bf16.msra.mxu0 0
    %462 = vmatprep.subr.bf16.mxu0 0
    %463 = vmatpush2.bf16.msra.mxu0 0
    %464 = vmatprep.subr.bf16.mxu0 0
    %465 = vmatpush2.bf16.msra.mxu0 0
    %466 = vmatprep.subr.bf16.mxu0 0
    %467 = vmatpush2.bf16.msra.mxu0 0
    %468 = vmatprep.mubr.bf16.mxu0 0
    %469 = vmatmul.mubr.bf16.gmra.mxu0 %v434
    %v470 = vpop.f32.mrf.mxu0
    %v471 = vadd.f32 %v140, %v470
    %v472 = vpop.f32.mrf.mxu0
    %v473 = vpop.f32.mrf.mxu0
    %v474 = vpop.f32.mrf.mxu0
    %475 = vdwg.mxu0
    %v476 = vtanh.pop %v471
    %v477 = vpack.c.bf16 %v476, %v476
    %v479 = vsel %vm162, %v477, 0
    %481 = vmatprep.subr.bf16.mxu0 0
    %482 = vmatpush1.bf16.msra.mxu0 0
    %483 = vmatprep.subr.bf16.mxu0 0
    %484 = vmatpush1.bf16.msra.mxu0 0
    %485 = vmatprep.subr.bf16.mxu0 0
    %486 = vmatpush1.bf16.msra.mxu0 0
    %487 = vmatprep.subr.bf16.mxu0 0
    %488 = vmatpush1.bf16.msra.mxu0 0
    %489 = vmatprep.subr.bf16.mxu0 0
    %490 = vmatpush1.bf16.msra.mxu0 0
    %491 = vmatprep.subr.bf16.mxu0 0
    %492 = vmatpush1.bf16.msra.mxu0 0
    %493 = vmatprep.subr.bf16.mxu0 0
    %494 = vmatpush1.bf16.msra.mxu0 %v159
    %495 = vmatprep.subr.bf16.mxu0 0
    %496 = vmatpush1.bf16.msra.mxu0 %v158
    %497 = vmatprep.subr.bf16.mxu0 0
    %498 = vmatpush2.bf16.msra.mxu0 0
    %499 = vmatprep.subr.bf16.mxu0 0
    %500 = vmatpush2.bf16.msra.mxu0 0
    %501 = vmatprep.subr.bf16.mxu0 0
    %502 = vmatpush2.bf16.msra.mxu0 0
    %503 = vmatprep.subr.bf16.mxu0 0
    %504 = vmatpush2.bf16.msra.mxu0 0
    %505 = vmatprep.subr.bf16.mxu0 0
    %506 = vmatpush2.bf16.msra.mxu0 0
    %507 = vmatprep.subr.bf16.mxu0 0
    %508 = vmatpush2.bf16.msra.mxu0 0
    %509 = vmatprep.subr.bf16.mxu0 0
    %510 = vmatpush2.bf16.msra.mxu0 0
    %511 = vmatprep.subr.bf16.mxu0 0
    %512 = vmatpush2.bf16.msra.mxu0 0
    %513 = vmatprep.mubr.bf16.mxu0 0
    %514 = vmatmul.mubr.bf16.gmra.mxu0 %v479
    %v515 = vpop.f32.mrf.mxu0
    %v516 = vadd.f32 %v143, %v515
    %v517 = vpop.f32.mrf.mxu0
    %v518 = vpop.f32.mrf.mxu0
    %v519 = vpop.f32.mrf.mxu0
    %520 = vdwg.mxu0
    %v521 = vtanh.pop %v516
    %v522 = vld [vmem:[%s4] sm:$0xff]
    %v523 = vld [vmem:[%s4 + $0x8] sm:$0xff]
    %v524 = vld [vmem:[%s4 + $0x10] sm:$0xff]
    %v525 = vld [vmem:[%s4 + $0x18] sm:$0xff]
    %v526 = vld [vmem:[%s5] sm:$0x1]
    %v528 = vlaneseq
    %v529 = vshrl.u32 %v528, 7
    %v530 = vsub.s32 0, %v529
    %v531 = vrot.slane %v526, %v530
    %v534 = vsel %vm162, %v521, 0
    %536 = vmatprep.subr.mxu0 0.0
    %537 = vmatpush1.msra.mxu0 0.0
    %538 = vmatprep.subr.mxu0 0.0
    %539 = vmatpush1.msra.mxu0 0.0
    %540 = vmatprep.subr.mxu0 0.0
    %541 = vmatpush1.msra.mxu0 0.0
    %542 = vmatprep.subr.mxu0 0.0
    %543 = vmatpush1.msra.mxu0 0.0
    %544 = vmatprep.subr.mxu0 0.0
    %545 = vmatpush1.msra.mxu0 0.0
    %546 = vmatprep.subr.mxu0 0.0
    %547 = vmatpush1.msra.mxu0 0.0
    %548 = vmatprep.subr.mxu0 0.0
    %549 = vmatpush1.msra.mxu0 0.0
    %550 = vmatprep.subr.mxu0 0.0
    %551 = vmatpush1.msra.mxu0 0.0
    %552 = vmatprep.subr.mxu0 0.0
    %553 = vmatpush1.msra.mxu0 0.0
    %554 = vmatprep.subr.mxu0 0.0
    %555 = vmatpush1.msra.mxu0 0.0
    %556 = vmatprep.subr.mxu0 0.0
    %557 = vmatpush1.msra.mxu0 0.0
    %558 = vmatprep.subr.mxu0 0.0
    %559 = vmatpush1.msra.mxu0 0.0
    %560 = vmatprep.subr.mxu0 0.0
    %561 = vmatpush1.msra.mxu0 %v525
    %562 = vmatprep.subr.mxu0 0.0
    %563 = vmatpush1.msra.mxu0 %v524
    %564 = vmatprep.subr.mxu0 0.0
    %565 = vmatpush1.msra.mxu0 %v523
    %566 = vmatprep.subr.mxu0 0.0
    %567 = vmatpush1.msra.mxu0 %v522
    %568 = vmatprep.subr.mxu0 0.0
    %569 = vmatpush2.msra.mxu0 0.0
    %570 = vmatprep.subr.mxu0 0.0
    %571 = vmatpush2.msra.mxu0 0.0
    %572 = vmatprep.subr.mxu0 0.0
    %573 = vmatpush2.msra.mxu0 0.0
    %574 = vmatprep.subr.mxu0 0.0
    %575 = vmatpush2.msra.mxu0 0.0
    %576 = vmatprep.subr.mxu0 0.0
    %577 = vmatpush2.msra.mxu0 0.0
    %578 = vmatprep.subr.mxu0 0.0
    %579 = vmatpush2.msra.mxu0 0.0
    %580 = vmatprep.subr.mxu0 0.0
    %581 = vmatpush2.msra.mxu0 0.0
    %582 = vmatprep.subr.mxu0 0.0
    %583 = vmatpush2.msra.mxu0 0.0
    %584 = vmatprep.subr.mxu0 0.0
    %585 = vmatpush2.msra.mxu0 0.0
    %586 = vmatprep.subr.mxu0 0.0
    %587 = vmatpush2.msra.mxu0 0.0
    %588 = vmatprep.subr.mxu0 0.0
    %589 = vmatpush2.msra.mxu0 0.0
    %590 = vmatprep.subr.mxu0 0.0
    %591 = vmatpush2.msra.mxu0 0.0
    %592 = vmatprep.subr.mxu0 0.0
    %593 = vmatpush2.msra.mxu0 0.0
    %594 = vmatprep.subr.mxu0 0.0
    %595 = vmatpush2.msra.mxu0 0.0
    %596 = vmatprep.subr.mxu0 0.0
    %597 = vmatpush2.msra.mxu0 0.0
    %598 = vmatprep.subr.mxu0 0.0
    %599 = vmatpush2.msra.mxu0 0.0
    %600 = vmatprep.mubr.f32.mxu0 0.0
    %601 = vmatmul.mubr.f32.gmra.mxu0 %v534
    %v602 = vpop.f32.mrf.mxu0
    %v603 = vadd.f32 %v531, %v602
    %v604 = vpop.f32.mrf.mxu0
    %605 = vdwg.mxu0
    %vm606 = vcmask 39936
    %v607 = vsel %vm606, %v603, -inf
    %608 = vmax.xlane.f32.xlu0 %v607
    %v609 = vpop.xlane.xlu0 %608
    %v610 = vsub.f32 %v603, %v609
    %v611 = vmul.f32 %v610, 1.442695
    %v612 = vpow.pop %v611
    %v613 = vsel %vm606, %v612, 0.0
    %614 = vadd.xlane.f32.xlu0 %v613
    %v615 = vpop.xlane.xlu0 %614
    %v616 = vlog2.pop %v615
    %v617 = vmul.f32 %v616, 0.6931472
    %v618 = vsub.f32 %v610, %v617
    %619 = vst.msk [vmem:[#allocation2] sm:$0xff] %vm606, %v618
    // Predicated region
    $region26: #{tpu_custom_call.1} parent=1 // pred_check
      _
    $region27: #{tpu_custom_call.1} parent=1 // pred_check_branch
      %621 = sbr.rel (0) target = $region29
    $region28: #{tpu_custom_call.1} parent=1 // pred_region
      %s623 = ssub.s32 128, 128
      %624 = vsyncadd [#allocation3], %s623
      %s626 = sshll.u32 [#allocation2], 4
      %s627 = int_to_ptr.vmem [resolvable:$true] %s626
      %629 = dma.vmem_to_hbm [thread:$0]  %s627, 128, %s6, [#allocation3]
    $region29: #{tpu_custom_call.1} parent=1 // pred_fallthru
      _
    // Predicated region
    $region30: #{tpu_custom_call.1} parent=1 // pred_check
      _
    $region31: #{tpu_custom_call.1} parent=1 // pred_check_branch
      %631 = sbr.rel (0) target = $region33
    $region32: #{tpu_custom_call.1} parent=1 // pred_region
      %632 = dma.done [#allocation3], 128
    $region33: #{tpu_custom_call.1} parent=1 // pred_fallthru
      _
    %633 = vsyncpa [#allocation3], 1

</llo_original>
